<compile_context>
chip_gen: v5e
topology: v5e:2x2
jax: 0.10.0
libtpu: 0.0.40
codegen_flags: <defaults>
</compile_context>

<pallas_src>
import functools

import jax
import jax.numpy as jnp
from jax.experimental import pallas as pl
from jax.experimental.pallas import tpu as pltpu


def _round_up(x: int, m: int) -> int:
    return -(-x // m) * m


def _q_mlp_kernel(x_ref, w1_ref, b1_ref, w2_ref, b2_ref, q_ref):
    """Fused Q-head: relu(x @ W1 + b1) @ W2 + b2 (bf16 MXU, f32 accum/epilogue).

    x_ref : [B_pad, F]      bf16  (VMEM)
    w1_ref: [F, H]          bf16  (VMEM)
    b1_ref: [1, H]          f32   (VMEM, broadcast over batch)
    w2_ref: [H, A_pad]      bf16  (VMEM, lane-padded to 128)
    b2_ref: [1, A_pad]      f32   (VMEM, lane-padded to 128)
    q_ref : [B_pad, A_pad]  f32   (VMEM output, lane-dense unmasked store)
    """
    # First matmul: bf16 operands, f32 accumulation on the MXU.
    h = jnp.dot(x_ref[...], w1_ref[...], preferred_element_type=jnp.float32)
    # Bias add + ReLU in f32 on the VPU (no bf16 VPU on v5e).
    h = jnp.maximum(h + b1_ref[...], 0.0)
    # Second matmul: cast activations back to bf16 for the MXU, f32 accum.
    q = jnp.dot(h.astype(jnp.bfloat16), w2_ref[...],
                preferred_element_type=jnp.float32)
    # Lane-dense (A_pad = multiple of 128) unmasked store.
    q_ref[...] = q + b2_ref[...]


@jax.jit
def metazoan_q_forward(state_nchw, w1, b1, w2, b2):
    """Concrete MetazoanQModel.forward: state [B,C,H,W] -> Q-values [B, A]."""
    B = state_nchw.shape[0]
    F = 1
    for d in state_nchw.shape[1:]:
        F *= d
    H = w1.shape[1]
    A = w2.shape[1]

    # Pad batch to full sublane occupancy and actions to a full lane tile so
    # every vreg row/lane is populated and the output store is unmasked.
    B_pad = max(8, _round_up(B, 8))
    A_pad = max(128, _round_up(A, 128))

    # Glue (fused by jit around the pallas_call): flatten NCHW -> [B, F]
    # (same row-major order as torch.flatten(state, 1)), cast MXU operands to
    # bf16, zero-pad batch / action lanes.
    x = state_nchw.reshape(B, F).astype(jnp.bfloat16)
    x_p = jnp.zeros((B_pad, F), jnp.bfloat16).at[:B, :].set(x)

    w1_b = w1.astype(jnp.bfloat16)
    b1_f = b1.astype(jnp.float32).reshape(1, H)

    w2_p = jnp.zeros((H, A_pad), jnp.bfloat16).at[:, :A].set(
        w2.astype(jnp.bfloat16))
    b2_p = jnp.zeros((1, A_pad), jnp.float32).at[:, :A].set(
        b2.astype(jnp.float32).reshape(1, A))

    vmem = functools.partial(pl.BlockSpec, memory_space=pltpu.MemorySpace.VMEM)
    q_pad = pl.pallas_call(
        _q_mlp_kernel,
        out_shape=jax.ShapeDtypeStruct((B_pad, A_pad), jnp.float32),
        in_specs=[vmem(), vmem(), vmem(), vmem(), vmem()],
        out_specs=vmem(),
    )(x_p, w1_b, b1_f, w2_p, b2_p)

    return q_pad[:B, :A]


def _init_params(key, feature_dim, hidden_dim, num_actions):
    """Deterministic parameter init (synthetic weights, no checkpoint)."""
    k1, k2, k3, k4 = jax.random.split(key, 4)
    scale1 = 1.0 / jnp.sqrt(jnp.float32(feature_dim))
    scale2 = 1.0 / jnp.sqrt(jnp.float32(hidden_dim))
    w1 = jax.random.uniform(k1, (feature_dim, hidden_dim), jnp.float32,
                            -scale1, scale1)
    b1 = jax.random.uniform(k2, (1, hidden_dim), jnp.float32, -scale1, scale1)
    w2 = jax.random.uniform(k3, (hidden_dim, num_actions), jnp.float32,
                            -scale2, scale2)
    b2 = jax.random.uniform(k4, (1, num_actions), jnp.float32, -scale2, scale2)
    return w1, b1, w2, b2


if __name__ == "__main__":
    # Small shapes consistent with an image-like state schema.
    B, C, Himg, Wimg = 2, 4, 16, 16      # state: [2, 4, 16, 16] (NCHW)
    HIDDEN = 32
    NUM_ACTIONS = 8
    FEATURES = C * Himg * Wimg           # 1024

    key = jax.random.PRNGKey(0)
    k_state, k_params = jax.random.split(key)

    state = jax.random.normal(k_state, (B, C, Himg, Wimg), jnp.float32)
    w1, b1, w2, b2 = _init_params(k_params, FEATURES, HIDDEN, NUM_ACTIONS)

    q_values = metazoan_q_forward(state, w1, b1, w2, b2)
    q_values = jax.block_until_ready(q_values)
    assert q_values.shape == (B, NUM_ACTIONS)

    # Reference 1: same bf16-operand / f32-accumulation path in plain JAX.
    x_flat = state.reshape(B, -1)
    h_bf = jnp.dot(x_flat.astype(jnp.bfloat16), w1.astype(jnp.bfloat16),
                   preferred_element_type=jnp.float32)
    h_bf = jnp.maximum(h_bf + b1, 0.0)
    q_ref_bf = jnp.dot(h_bf.astype(jnp.bfloat16), w2.astype(jnp.bfloat16),
                       preferred_element_type=jnp.float32) + b2
    assert jnp.allclose(q_values, q_ref_bf, atol=1e-2, rtol=1e-2)

    # Reference 2: full-f32 reference (looser tolerance for bf16 matmuls).
    h_f32 = jnp.maximum(x_flat @ w1 + b1, 0.0)
    q_ref_f32 = h_f32 @ w2 + b2
    assert jnp.allclose(q_values, q_ref_f32, atol=6e-2, rtol=6e-2)

    print("KERNEL_OK")
</pallas_src>

<mosaic_0001>
module attributes {stable_mosaic.version = 11 : i64} {
  func.func @_q_mlp_kernel(%arg0: memref<8x1024xbf16, #tpu.memory_space<vmem>>, %arg1: memref<1024x32xbf16, #tpu.memory_space<vmem>>, %arg2: memref<1x32xf32, #tpu.memory_space<vmem>>, %arg3: memref<32x128xbf16, #tpu.memory_space<vmem>>, %arg4: memref<1x128xf32, #tpu.memory_space<vmem>>, %arg5: memref<8x128xf32, #tpu.memory_space<vmem>>) attributes {dimension_semantics = [], scalar_prefetch = 0 : i64, scratch_operands = 0 : i64, tpu.core_type = #tpu.core_type<tc>} {
    %c0 = arith.constant 0 : index
    %c0_0 = arith.constant 0 : index
    %0 = vector.load %arg0[%c0, %c0_0] : memref<8x1024xbf16, #tpu.memory_space<vmem>>, vector<8x1024xbf16>
    %c0_1 = arith.constant 0 : index
    %c0_2 = arith.constant 0 : index
    %1 = vector.load %arg1[%c0_1, %c0_2] : memref<1024x32xbf16, #tpu.memory_space<vmem>>, vector<1024x32xbf16>
    %cst = arith.constant dense<0.000000e+00> : vector<8x32xf32>
    %2 = tpu.matmul %0, %1, %cst {dimension_numbers = #tpu.dot_dimension_numbers<[1], [0], [0], [1], [0, 0, 1, 1], [], []>} : vector<8x1024xbf16>, vector<1024x32xbf16>, vector<8x32xf32> -> vector<8x32xf32>
    %c0_3 = arith.constant 0 : index
    %c0_4 = arith.constant 0 : index
    %3 = vector.load %arg2[%c0_3, %c0_4] : memref<1x32xf32, #tpu.memory_space<vmem>>, vector<1x32xf32>
    %4 = vector.broadcast %3 : vector<1x32xf32> to vector<8x32xf32>
    %5 = arith.addf %2, %4 : vector<8x32xf32>
    %cst_5 = arith.constant 0.000000e+00 : f32
    %6 = vector.broadcast %cst_5 : f32 to vector<8x32xf32>
    %7 = arith.maximumf %5, %6 : vector<8x32xf32>
    %8 = arith.truncf %7 : vector<8x32xf32> to vector<8x32xbf16>
    %c0_6 = arith.constant 0 : index
    %c0_7 = arith.constant 0 : index
    %9 = vector.load %arg3[%c0_6, %c0_7] : memref<32x128xbf16, #tpu.memory_space<vmem>>, vector<32x128xbf16>
    %cst_8 = arith.constant dense<0.000000e+00> : vector<8x128xf32>
    %10 = tpu.matmul %8, %9, %cst_8 {dimension_numbers = #tpu.dot_dimension_numbers<[1], [0], [0], [1], [0, 0, 1, 1], [], []>} : vector<8x32xbf16>, vector<32x128xbf16>, vector<8x128xf32> -> vector<8x128xf32>
    %c0_9 = arith.constant 0 : index
    %c0_10 = arith.constant 0 : index
    %11 = vector.load %arg4[%c0_9, %c0_10] : memref<1x128xf32, #tpu.memory_space<vmem>>, vector<1x128xf32>
    %12 = vector.broadcast %11 : vector<1x128xf32> to vector<8x128xf32>
    %13 = arith.addf %10, %12 : vector<8x128xf32>
    %c0_11 = arith.constant 0 : index
    %c0_12 = arith.constant 0 : index
    %14 = vector.load %arg5[%c0_11, %c0_12] : memref<8x128xf32, #tpu.memory_space<vmem>>, vector<8x128xf32>
    tpu.vector_store %arg5[%c0_11, %c0_12], %13 {strides = array<i32>} : memref<8x128xf32, #tpu.memory_space<vmem>>, vector<8x128xf32>,
    return
  }
}

</mosaic_0001>

<llo_original>
// kernel: metazoan_q_forward.1
$region0: #{metazoan_q_forward.1}
  #allocation0 [shape = 'u32[]', space=smem, size = 0x4, offset = 0x4, fixed_abs, tag = 'smem constant byte address 0x4 - core index']
  #allocation1 [shape = 'u32[72,128]{1,0:T(1,128)}', space=vmem, size = 0x9000, scoped, tag = 'internal scratch']
  %s0 = inlined_call_operand.vmem [shape: bf16[8,1024], index: 0, kind: input, shape index: {}]
  %s1 = inlined_call_operand.vmem [shape: bf16[1024,32], index: 1, kind: input, shape index: {}]
  %s2 = inlined_call_operand.vmem [shape: f32[1,32], index: 2, kind: input, shape index: {}]
  %s3 = inlined_call_operand.vmem [shape: bf16[32,128], index: 3, kind: input, shape index: {}]
  %s4 = inlined_call_operand.vmem [shape: f32[1,128], index: 4, kind: input, shape index: {}]
  %s5 = inlined_call_operand.vmem [shape: f32[8,128], index: 5, kind: output, shape index: {}]
  %s6 = sld [smem:[#allocation0]]
  $region30: #{metazoan_q_forward.1} parent=0
    _
  %s8 = ssub.s32 1, %s6
  %s9 = scalar_select 0, %s8, %s6
  // Predicated region
  $region2: #{metazoan_q_forward.1} parent=0 // pred_check
    _
  $region3: #{metazoan_q_forward.1} parent=0 // pred_check_branch
    %11 = sbr.rel (0) target = $region5
  $region4: #{metazoan_q_forward.1} parent=0 // pred_region
    _
  $region5: #{metazoan_q_forward.1} parent=0 // pred_fallthru
    _
  // Predicated region
  $region6: #{metazoan_q_forward.1} parent=0 // pred_check
    _
  $region7: #{metazoan_q_forward.1} parent=0 // pred_check_branch
    %13 = sbr.rel (0) target = $region9
  $region8: #{metazoan_q_forward.1} parent=0 // pred_region
    _
  $region9: #{metazoan_q_forward.1} parent=0 // pred_fallthru
    _
  // Predicated region
  $region10: #{metazoan_q_forward.1} parent=0 // pred_check
    _
  $region11: #{metazoan_q_forward.1} parent=0 // pred_check_branch
    %15 = sbr.rel (0) target = $region13
  $region12: #{metazoan_q_forward.1} parent=0 // pred_region
    _
  $region13: #{metazoan_q_forward.1} parent=0 // pred_fallthru
    _
  // Predicated region
  $region14: #{metazoan_q_forward.1} parent=0 // pred_check
    _
  $region15: #{metazoan_q_forward.1} parent=0 // pred_check_branch
    %17 = sbr.rel (0) target = $region17
  $region16: #{metazoan_q_forward.1} parent=0 // pred_region
    _
  $region17: #{metazoan_q_forward.1} parent=0 // pred_fallthru
    _
  // Predicated region
  $region18: #{metazoan_q_forward.1} parent=0 // pred_check
    _
  $region19: #{metazoan_q_forward.1} parent=0 // pred_check_branch
    %19 = sbr.rel (0) target = $region21
  $region20: #{metazoan_q_forward.1} parent=0 // pred_region
    _
  $region21: #{metazoan_q_forward.1} parent=0 // pred_fallthru
    _
  %v21 = vld [vmem:[%s0] sm:$0xff]
  %v22 = vld [vmem:[%s0 + $0x8] sm:$0xff]
  %v23 = vld [vmem:[%s0 + $0x10] sm:$0xff]
  %v24 = vld [vmem:[%s0 + $0x18] sm:$0xff]
  %v25 = vld [vmem:[%s1] sm:$0xf]
  %v26 = vld [vmem:[%s1 + $0x4] sm:$0xf]
  %v27 = vld [vmem:[%s1 + $0x8] sm:$0xf]
  %v28 = vld [vmem:[%s1 + $0xc] sm:$0xf]
  %v29 = vld [vmem:[%s1 + $0x10] sm:$0xf]
  %v30 = vld [vmem:[%s1 + $0x14] sm:$0xf]
  %v31 = vld [vmem:[%s1 + $0x18] sm:$0xf]
  %v32 = vld [vmem:[%s1 + $0x1c] sm:$0xf]
  %v33 = vld [vmem:[%s1 + $0x20] sm:$0xf]
  %v34 = vld [vmem:[%s1 + $0x24] sm:$0xf]
  %v35 = vld [vmem:[%s1 + $0x28] sm:$0xf]
  %v36 = vld [vmem:[%s1 + $0x2c] sm:$0xf]
  %v37 = vld [vmem:[%s1 + $0x30] sm:$0xf]
  %v38 = vld [vmem:[%s1 + $0x34] sm:$0xf]
  %v39 = vld [vmem:[%s1 + $0x38] sm:$0xf]
  %v40 = vld [vmem:[%s1 + $0x3c] sm:$0xf]
  %v41 = vld [vmem:[%s1 + $0x40] sm:$0xf]
  %v42 = vld [vmem:[%s1 + $0x44] sm:$0xf]
  %v43 = vld [vmem:[%s1 + $0x48] sm:$0xf]
  %v44 = vld [vmem:[%s1 + $0x4c] sm:$0xf]
  %v45 = vld [vmem:[%s1 + $0x50] sm:$0xf]
  %v46 = vld [vmem:[%s1 + $0x54] sm:$0xf]
  %v47 = vld [vmem:[%s1 + $0x58] sm:$0xf]
  %v48 = vld [vmem:[%s1 + $0x5c] sm:$0xf]
  %v49 = vld [vmem:[%s1 + $0x60] sm:$0xf]
  %v50 = vld [vmem:[%s1 + $0x64] sm:$0xf]
  %v51 = vld [vmem:[%s1 + $0x68] sm:$0xf]
  %v52 = vld [vmem:[%s1 + $0x6c] sm:$0xf]
  %v53 = vld [vmem:[%s1 + $0x70] sm:$0xf]
  %v54 = vld [vmem:[%s1 + $0x74] sm:$0xf]
  %v55 = vld [vmem:[%s1 + $0x78] sm:$0xf]
  %v56 = vld [vmem:[%s1 + $0x7c] sm:$0xf]
  %v57 = vld [vmem:[%s1 + $0x80] sm:$0xf]
  %v58 = vld [vmem:[%s1 + $0x84] sm:$0xf]
  %v59 = vld [vmem:[%s1 + $0x88] sm:$0xf]
  %v60 = vld [vmem:[%s1 + $0x8c] sm:$0xf]
  %v61 = vld [vmem:[%s1 + $0x90] sm:$0xf]
  %v62 = vld [vmem:[%s1 + $0x94] sm:$0xf]
  %v63 = vld [vmem:[%s1 + $0x98] sm:$0xf]
  %v64 = vld [vmem:[%s1 + $0x9c] sm:$0xf]
  %v65 = vld [vmem:[%s1 + $0xa0] sm:$0xf]
  %v66 = vld [vmem:[%s1 + $0xa4] sm:$0xf]
  %v67 = vld [vmem:[%s1 + $0xa8] sm:$0xf]
  %v68 = vld [vmem:[%s1 + $0xac] sm:$0xf]
  %v69 = vld [vmem:[%s1 + $0xb0] sm:$0xf]
  %v70 = vld [vmem:[%s1 + $0xb4] sm:$0xf]
  %v71 = vld [vmem:[%s1 + $0xb8] sm:$0xf]
  %v72 = vld [vmem:[%s1 + $0xbc] sm:$0xf]
  %v73 = vld [vmem:[%s1 + $0xc0] sm:$0xf]
  %v74 = vld [vmem:[%s1 + $0xc4] sm:$0xf]
  %v75 = vld [vmem:[%s1 + $0xc8] sm:$0xf]
  %v76 = vld [vmem:[%s1 + $0xcc] sm:$0xf]
  %v77 = vld [vmem:[%s1 + $0xd0] sm:$0xf]
  %v78 = vld [vmem:[%s1 + $0xd4] sm:$0xf]
  %v79 = vld [vmem:[%s1 + $0xd8] sm:$0xf]
  %v80 = vld [vmem:[%s1 + $0xdc] sm:$0xf]
  %v81 = vld [vmem:[%s1 + $0xe0] sm:$0xf]
  %v82 = vld [vmem:[%s1 + $0xe4] sm:$0xf]
  %v83 = vld [vmem:[%s1 + $0xe8] sm:$0xf]
  %v84 = vld [vmem:[%s1 + $0xec] sm:$0xf]
  %v85 = vld [vmem:[%s1 + $0xf0] sm:$0xf]
  %v86 = vld [vmem:[%s1 + $0xf4] sm:$0xf]
  %v87 = vld [vmem:[%s1 + $0xf8] sm:$0xf]
  %v88 = vld [vmem:[%s1 + $0xfc] sm:$0xf]
  %v89 = vld [vmem:[%s1 + $0x100] sm:$0xf]
  %v90 = vld [vmem:[%s1 + $0x104] sm:$0xf]
  %v91 = vld [vmem:[%s1 + $0x108] sm:$0xf]
  %v92 = vld [vmem:[%s1 + $0x10c] sm:$0xf]
  %v93 = vld [vmem:[%s1 + $0x110] sm:$0xf]
  %v94 = vld [vmem:[%s1 + $0x114] sm:$0xf]
  %v95 = vld [vmem:[%s1 + $0x118] sm:$0xf]
  %v96 = vld [vmem:[%s1 + $0x11c] sm:$0xf]
  %v97 = vld [vmem:[%s1 + $0x120] sm:$0xf]
  %v98 = vld [vmem:[%s1 + $0x124] sm:$0xf]
  %v99 = vld [vmem:[%s1 + $0x128] sm:$0xf]
  %v100 = vld [vmem:[%s1 + $0x12c] sm:$0xf]
  %v101 = vld [vmem:[%s1 + $0x130] sm:$0xf]
  %v102 = vld [vmem:[%s1 + $0x134] sm:$0xf]
  %v103 = vld [vmem:[%s1 + $0x138] sm:$0xf]
  %v104 = vld [vmem:[%s1 + $0x13c] sm:$0xf]
  %v105 = vld [vmem:[%s1 + $0x140] sm:$0xf]
  %v106 = vld [vmem:[%s1 + $0x144] sm:$0xf]
  %v107 = vld [vmem:[%s1 + $0x148] sm:$0xf]
  %v108 = vld [vmem:[%s1 + $0x14c] sm:$0xf]
  %v109 = vld [vmem:[%s1 + $0x150] sm:$0xf]
  %v110 = vld [vmem:[%s1 + $0x154] sm:$0xf]
  %v111 = vld [vmem:[%s1 + $0x158] sm:$0xf]
  %v112 = vld [vmem:[%s1 + $0x15c] sm:$0xf]
  %v113 = vld [vmem:[%s1 + $0x160] sm:$0xf]
  %v114 = vld [vmem:[%s1 + $0x164] sm:$0xf]
  %v115 = vld [vmem:[%s1 + $0x168] sm:$0xf]
  %v116 = vld [vmem:[%s1 + $0x16c] sm:$0xf]
  %v117 = vld [vmem:[%s1 + $0x170] sm:$0xf]
  %v118 = vld [vmem:[%s1 + $0x174] sm:$0xf]
  %v119 = vld [vmem:[%s1 + $0x178] sm:$0xf]
  %v120 = vld [vmem:[%s1 + $0x17c] sm:$0xf]
  %v121 = vld [vmem:[%s1 + $0x180] sm:$0xf]
  %v122 = vld [vmem:[%s1 + $0x184] sm:$0xf]
  %v123 = vld [vmem:[%s1 + $0x188] sm:$0xf]
  %v124 = vld [vmem:[%s1 + $0x18c] sm:$0xf]
  %v125 = vld [vmem:[%s1 + $0x190] sm:$0xf]
  %v126 = vld [vmem:[%s1 + $0x194] sm:$0xf]
  %v127 = vld [vmem:[%s1 + $0x198] sm:$0xf]
  %v128 = vld [vmem:[%s1 + $0x19c] sm:$0xf]
  %v129 = vld [vmem:[%s1 + $0x1a0] sm:$0xf]
  %v130 = vld [vmem:[%s1 + $0x1a4] sm:$0xf]
  %v131 = vld [vmem:[%s1 + $0x1a8] sm:$0xf]
  %v132 = vld [vmem:[%s1 + $0x1ac] sm:$0xf]
  %v133 = vld [vmem:[%s1 + $0x1b0] sm:$0xf]
  %v134 = vld [vmem:[%s1 + $0x1b4] sm:$0xf]
  %v135 = vld [vmem:[%s1 + $0x1b8] sm:$0xf]
  %v136 = vld [vmem:[%s1 + $0x1bc] sm:$0xf]
  %v137 = vld [vmem:[%s1 + $0x1c0] sm:$0xf]
  %v138 = vld [vmem:[%s1 + $0x1c4] sm:$0xf]
  %v139 = vld [vmem:[%s1 + $0x1c8] sm:$0xf]
  %v140 = vld [vmem:[%s1 + $0x1cc] sm:$0xf]
  %v141 = vld [vmem:[%s1 + $0x1d0] sm:$0xf]
  %v142 = vld [vmem:[%s1 + $0x1d4] sm:$0xf]
  %v143 = vld [vmem:[%s1 + $0x1d8] sm:$0xf]
  %v144 = vld [vmem:[%s1 + $0x1dc] sm:$0xf]
  %v145 = vld [vmem:[%s1 + $0x1e0] sm:$0xf]
  %v146 = vld [vmem:[%s1 + $0x1e4] sm:$0xf]
  %v147 = vld [vmem:[%s1 + $0x1e8] sm:$0xf]
  %v148 = vld [vmem:[%s1 + $0x1ec] sm:$0xf]
  %v149 = vld [vmem:[%s1 + $0x1f0] sm:$0xf]
  %v150 = vld [vmem:[%s1 + $0x1f4] sm:$0xf]
  %v151 = vld [vmem:[%s1 + $0x1f8] sm:$0xf]
  %v152 = vld [vmem:[%s1 + $0x1fc] sm:$0xf]
  %v153 = vld [vmem:[%s2] sm:$0x1]
  %v155 = vperm.slane %v153, 0
  %v161 = vunpack.c.l.b16 %v21
  %v162 = vunpack.c.h.b16 %v21
  %v163 = vunpack.c.l.b16 %v22
  %v164 = vunpack.c.h.b16 %v22
  %v165 = vunpack.c.l.b16 %v23
  %v166 = vunpack.c.h.b16 %v23
  %v167 = vunpack.c.l.b16 %v24
  %v168 = vunpack.c.h.b16 %v24
  %v169 = vpack.c.b16 %v161, %v161
  %v170 = vpack.c.b16 %v162, %v162
  %v171 = vpack.c.b16 %v163, %v163
  %v172 = vpack.c.b16 %v164, %v164
  %v173 = vpack.c.b16 %v165, %v165
  %v174 = vpack.c.b16 %v166, %v166
  %v175 = vpack.c.b16 %v167, %v167
  %v176 = vpack.c.b16 %v168, %v168
  %v313 = vunpack.c.l.b16 %v25
  %v314 = vunpack.c.l.b16 %v26
  %v315 = vunpack.c.l.b16 %v27
  %v316 = vunpack.c.l.b16 %v28
  %v317 = vunpack.c.l.b16 %v29
  %v318 = vunpack.c.l.b16 %v30
  %v319 = vunpack.c.l.b16 %v31
  %v320 = vunpack.c.l.b16 %v32
  %v321 = vunpack.c.l.b16 %v33
  %v322 = vunpack.c.l.b16 %v34
  %v323 = vunpack.c.l.b16 %v35
  %v324 = vunpack.c.l.b16 %v36
  %v325 = vunpack.c.l.b16 %v37
  %v326 = vunpack.c.l.b16 %v38
  %v327 = vunpack.c.l.b16 %v39
  %v328 = vunpack.c.l.b16 %v40
  %v329 = vunpack.c.l.b16 %v41
  %v330 = vunpack.c.l.b16 %v42
  %v331 = vunpack.c.l.b16 %v43
  %v332 = vunpack.c.l.b16 %v44
  %v333 = vunpack.c.l.b16 %v45
  %v334 = vunpack.c.l.b16 %v46
  %v335 = vunpack.c.l.b16 %v47
  %v336 = vunpack.c.l.b16 %v48
  %v337 = vunpack.c.l.b16 %v49
  %v338 = vunpack.c.l.b16 %v50
  %v339 = vunpack.c.l.b16 %v51
  %v340 = vunpack.c.l.b16 %v52
  %v341 = vunpack.c.l.b16 %v53
  %v342 = vunpack.c.l.b16 %v54
  %v343 = vunpack.c.l.b16 %v55
  %v344 = vunpack.c.l.b16 %v56
  %v345 = vunpack.c.l.b16 %v57
  %v346 = vunpack.c.l.b16 %v58
  %v347 = vunpack.c.l.b16 %v59
  %v348 = vunpack.c.l.b16 %v60
  %v349 = vunpack.c.l.b16 %v61
  %v350 = vunpack.c.l.b16 %v62
  %v351 = vunpack.c.l.b16 %v63
  %v352 = vunpack.c.l.b16 %v64
  %v353 = vunpack.c.l.b16 %v65
  %v354 = vunpack.c.l.b16 %v66
  %v355 = vunpack.c.l.b16 %v67
  %v356 = vunpack.c.l.b16 %v68
  %v357 = vunpack.c.l.b16 %v69
  %v358 = vunpack.c.l.b16 %v70
  %v359 = vunpack.c.l.b16 %v71
  %v360 = vunpack.c.l.b16 %v72
  %v361 = vunpack.c.l.b16 %v73
  %v362 = vunpack.c.l.b16 %v74
  %v363 = vunpack.c.l.b16 %v75
  %v364 = vunpack.c.l.b16 %v76
  %v365 = vunpack.c.l.b16 %v77
  %v366 = vunpack.c.l.b16 %v78
  %v367 = vunpack.c.l.b16 %v79
  %v368 = vunpack.c.l.b16 %v80
  %v369 = vunpack.c.l.b16 %v81
  %v370 = vunpack.c.l.b16 %v82
  %v371 = vunpack.c.l.b16 %v83
  %v372 = vunpack.c.l.b16 %v84
  %v373 = vunpack.c.l.b16 %v85
  %v374 = vunpack.c.l.b16 %v86
  %v375 = vunpack.c.l.b16 %v87
  %v376 = vunpack.c.l.b16 %v88
  %v377 = vunpack.c.l.b16 %v89
  %v378 = vunpack.c.l.b16 %v90
  %v379 = vunpack.c.l.b16 %v91
  %v380 = vunpack.c.l.b16 %v92
  %v381 = vunpack.c.l.b16 %v93
  %v382 = vunpack.c.l.b16 %v94
  %v383 = vunpack.c.l.b16 %v95
  %v384 = vunpack.c.l.b16 %v96
  %v385 = vunpack.c.l.b16 %v97
  %v386 = vunpack.c.l.b16 %v98
  %v387 = vunpack.c.l.b16 %v99
  %v388 = vunpack.c.l.b16 %v100
  %v389 = vunpack.c.l.b16 %v101
  %v390 = vunpack.c.l.b16 %v102
  %v391 = vunpack.c.l.b16 %v103
  %v392 = vunpack.c.l.b16 %v104
  %v393 = vunpack.c.l.b16 %v105
  %v394 = vunpack.c.l.b16 %v106
  %v395 = vunpack.c.l.b16 %v107
  %v396 = vunpack.c.l.b16 %v108
  %v397 = vunpack.c.l.b16 %v109
  %v398 = vunpack.c.l.b16 %v110
  %v399 = vunpack.c.l.b16 %v111
  %v400 = vunpack.c.l.b16 %v112
  %v401 = vunpack.c.l.b16 %v113
  %v402 = vunpack.c.l.b16 %v114
  %v403 = vunpack.c.l.b16 %v115
  %v404 = vunpack.c.l.b16 %v116
  %v405 = vunpack.c.l.b16 %v117
  %v406 = vunpack.c.l.b16 %v118
  %v407 = vunpack.c.l.b16 %v119
  %v408 = vunpack.c.l.b16 %v120
  %v409 = vunpack.c.l.b16 %v121
  %v410 = vunpack.c.l.b16 %v122
  %v411 = vunpack.c.l.b16 %v123
  %v412 = vunpack.c.l.b16 %v124
  %v413 = vunpack.c.l.b16 %v125
  %v414 = vunpack.c.l.b16 %v126
  %v415 = vunpack.c.l.b16 %v127
  %v416 = vunpack.c.l.b16 %v128
  %v417 = vunpack.c.l.b16 %v129
  %v418 = vunpack.c.l.b16 %v130
  %v419 = vunpack.c.l.b16 %v131
  %v420 = vunpack.c.l.b16 %v132
  %v421 = vunpack.c.l.b16 %v133
  %v422 = vunpack.c.l.b16 %v134
  %v423 = vunpack.c.l.b16 %v135
  %v424 = vunpack.c.l.b16 %v136
  %v425 = vunpack.c.l.b16 %v137
  %v426 = vunpack.c.l.b16 %v138
  %v427 = vunpack.c.l.b16 %v139
  %v428 = vunpack.c.l.b16 %v140
  %v429 = vunpack.c.l.b16 %v141
  %v430 = vunpack.c.l.b16 %v142
  %v431 = vunpack.c.l.b16 %v143
  %v432 = vunpack.c.l.b16 %v144
  %v433 = vunpack.c.l.b16 %v145
  %v434 = vunpack.c.l.b16 %v146
  %v435 = vunpack.c.l.b16 %v147
  %v436 = vunpack.c.l.b16 %v148
  %v437 = vunpack.c.l.b16 %v149
  %v438 = vunpack.c.l.b16 %v150
  %v439 = vunpack.c.l.b16 %v151
  %v440 = vunpack.c.l.b16 %v152
  %v441 = vpack.c.b16 %v314, %v313
  %v442 = vpack.c.b16 %v316, %v315
  %v443 = vpack.c.b16 %v318, %v317
  %v444 = vpack.c.b16 %v320, %v319
  %v445 = vpack.c.b16 %v322, %v321
  %v446 = vpack.c.b16 %v324, %v323
  %v447 = vpack.c.b16 %v326, %v325
  %v448 = vpack.c.b16 %v328, %v327
  %v449 = vpack.c.b16 %v330, %v329
  %v450 = vpack.c.b16 %v332, %v331
  %v451 = vpack.c.b16 %v334, %v333
  %v452 = vpack.c.b16 %v336, %v335
  %v453 = vpack.c.b16 %v338, %v337
  %v454 = vpack.c.b16 %v340, %v339
  %v455 = vpack.c.b16 %v342, %v341
  %v456 = vpack.c.b16 %v344, %v343
  %v457 = vpack.c.b16 %v346, %v345
  %v458 = vpack.c.b16 %v348, %v347
  %v459 = vpack.c.b16 %v350, %v349
  %v460 = vpack.c.b16 %v352, %v351
  %v461 = vpack.c.b16 %v354, %v353
  %v462 = vpack.c.b16 %v356, %v355
  %v463 = vpack.c.b16 %v358, %v357
  %v464 = vpack.c.b16 %v360, %v359
  %v465 = vpack.c.b16 %v362, %v361
  %v466 = vpack.c.b16 %v364, %v363
  %v467 = vpack.c.b16 %v366, %v365
  %v468 = vpack.c.b16 %v368, %v367
  %v469 = vpack.c.b16 %v370, %v369
  %v470 = vpack.c.b16 %v372, %v371
  %v471 = vpack.c.b16 %v374, %v373
  %v472 = vpack.c.b16 %v376, %v375
  %v473 = vpack.c.b16 %v378, %v377
  %v474 = vpack.c.b16 %v380, %v379
  %v475 = vpack.c.b16 %v382, %v381
  %v476 = vpack.c.b16 %v384, %v383
  %v477 = vpack.c.b16 %v386, %v385
  %v478 = vpack.c.b16 %v388, %v387
  %v479 = vpack.c.b16 %v390, %v389
  %v480 = vpack.c.b16 %v392, %v391
  %v481 = vpack.c.b16 %v394, %v393
  %v482 = vpack.c.b16 %v396, %v395
  %v483 = vpack.c.b16 %v398, %v397
  %v484 = vpack.c.b16 %v400, %v399
  %v485 = vpack.c.b16 %v402, %v401
  %v486 = vpack.c.b16 %v404, %v403
  %v487 = vpack.c.b16 %v406, %v405
  %v488 = vpack.c.b16 %v408, %v407
  %v489 = vpack.c.b16 %v410, %v409
  %v490 = vpack.c.b16 %v412, %v411
  %v491 = vpack.c.b16 %v414, %v413
  %v492 = vpack.c.b16 %v416, %v415
  %v493 = vpack.c.b16 %v418, %v417
  %v494 = vpack.c.b16 %v420, %v419
  %v495 = vpack.c.b16 %v422, %v421
  %v496 = vpack.c.b16 %v424, %v423
  %v497 = vpack.c.b16 %v426, %v425
  %v498 = vpack.c.b16 %v428, %v427
  %v499 = vpack.c.b16 %v430, %v429
  %v500 = vpack.c.b16 %v432, %v431
  %v501 = vpack.c.b16 %v434, %v433
  %v502 = vpack.c.b16 %v436, %v435
  %v503 = vpack.c.b16 %v438, %v437
  %v504 = vpack.c.b16 %v440, %v439
  %569 = vmatpush.bf16.msra.mxu0 %v448
  %570 = vmatpush.bf16.msra.mxu0 %v447
  %571 = vmatpush.bf16.msra.mxu0 %v446
  %572 = vmatpush.bf16.msra.mxu0 %v445
  %573 = vmatpush.bf16.msra.mxu0 %v444
  %574 = vmatpush.bf16.msra.mxu0 %v443
  %575 = vmatpush.bf16.msra.mxu0 %v442
  %576 = vmatpush.bf16.msra.mxu0 %v441
  %577 = vmatmul.bf16.gmra.mxu0 %v169
  %v578 = vpop.f32.mrf.mxu0
  %v579 = vadd.f32 %v155, %v578
  %v580 = vpop.f32.mrf.mxu0
  %581 = vdwg.mxu0
  %582 = vmatpush.bf16.msra.mxu0 %v456
  %583 = vmatpush.bf16.msra.mxu0 %v455
  %584 = vmatpush.bf16.msra.mxu0 %v454
  %585 = vmatpush.bf16.msra.mxu0 %v453
  %586 = vmatpush.bf16.msra.mxu0 %v452
  %587 = vmatpush.bf16.msra.mxu0 %v451
  %588 = vmatpush.bf16.msra.mxu0 %v450
  %589 = vmatpush.bf16.msra.mxu0 %v449
  %590 = vmatmul.bf16.gmra.mxu0 %v170
  %v591 = vpop.f32.mrf.mxu0
  %v592 = vadd.f32 %v579, %v591
  %v593 = vpop.f32.mrf.mxu0
  %594 = vdwg.mxu0
  %595 = vmatpush.bf16.msra.mxu0 %v464
  %596 = vmatpush.bf16.msra.mxu0 %v463
  %597 = vmatpush.bf16.msra.mxu0 %v462
  %598 = vmatpush.bf16.msra.mxu0 %v461
  %599 = vmatpush.bf16.msra.mxu0 %v460
  %600 = vmatpush.bf16.msra.mxu0 %v459
  %601 = vmatpush.bf16.msra.mxu0 %v458
  %602 = vmatpush.bf16.msra.mxu0 %v457
  %603 = vmatmul.bf16.gmra.mxu0 %v171
  %v604 = vpop.f32.mrf.mxu0
  %v605 = vadd.f32 %v592, %v604
  %v606 = vpop.f32.mrf.mxu0
  %607 = vdwg.mxu0
  %608 = vmatpush.bf16.msra.mxu0 %v472
  %609 = vmatpush.bf16.msra.mxu0 %v471
  %610 = vmatpush.bf16.msra.mxu0 %v470
  %611 = vmatpush.bf16.msra.mxu0 %v469
  %612 = vmatpush.bf16.msra.mxu0 %v468
  %613 = vmatpush.bf16.msra.mxu0 %v467
  %614 = vmatpush.bf16.msra.mxu0 %v466
  %615 = vmatpush.bf16.msra.mxu0 %v465
  %616 = vmatmul.bf16.gmra.mxu0 %v172
  %v617 = vpop.f32.mrf.mxu0
  %v618 = vadd.f32 %v605, %v617
  %v619 = vpop.f32.mrf.mxu0
  %620 = vdwg.mxu0
  %621 = vmatpush.bf16.msra.mxu0 %v480
  %622 = vmatpush.bf16.msra.mxu0 %v479
  %623 = vmatpush.bf16.msra.mxu0 %v478
  %624 = vmatpush.bf16.msra.mxu0 %v477
  %625 = vmatpush.bf16.msra.mxu0 %v476
  %626 = vmatpush.bf16.msra.mxu0 %v475
  %627 = vmatpush.bf16.msra.mxu0 %v474
  %628 = vmatpush.bf16.msra.mxu0 %v473
  %629 = vmatmul.bf16.gmra.mxu0 %v173
  %v630 = vpop.f32.mrf.mxu0
  %v631 = vadd.f32 %v618, %v630
  %v632 = vpop.f32.mrf.mxu0
  %633 = vdwg.mxu0
  %634 = vmatpush.bf16.msra.mxu0 %v488
  %635 = vmatpush.bf16.msra.mxu0 %v487
  %636 = vmatpush.bf16.msra.mxu0 %v486
  %637 = vmatpush.bf16.msra.mxu0 %v485
  %638 = vmatpush.bf16.msra.mxu0 %v484
  %639 = vmatpush.bf16.msra.mxu0 %v483
  %640 = vmatpush.bf16.msra.mxu0 %v482
  %641 = vmatpush.bf16.msra.mxu0 %v481
  %642 = vmatmul.bf16.gmra.mxu0 %v174
  %v643 = vpop.f32.mrf.mxu0
  %v644 = vadd.f32 %v631, %v643
  %v645 = vpop.f32.mrf.mxu0
  %646 = vdwg.mxu0
  %647 = vmatpush.bf16.msra.mxu0 %v496
  %648 = vmatpush.bf16.msra.mxu0 %v495
  %649 = vmatpush.bf16.msra.mxu0 %v494
  %650 = vmatpush.bf16.msra.mxu0 %v493
  %651 = vmatpush.bf16.msra.mxu0 %v492
  %652 = vmatpush.bf16.msra.mxu0 %v491
  %653 = vmatpush.bf16.msra.mxu0 %v490
  %654 = vmatpush.bf16.msra.mxu0 %v489
  %655 = vmatmul.bf16.gmra.mxu0 %v175
  %v656 = vpop.f32.mrf.mxu0
  %v657 = vadd.f32 %v644, %v656
  %v658 = vpop.f32.mrf.mxu0
  %659 = vdwg.mxu0
  %660 = vmatpush.bf16.msra.mxu0 %v504
  %661 = vmatpush.bf16.msra.mxu0 %v503
  %662 = vmatpush.bf16.msra.mxu0 %v502
  %663 = vmatpush.bf16.msra.mxu0 %v501
  %664 = vmatpush.bf16.msra.mxu0 %v500
  %665 = vmatpush.bf16.msra.mxu0 %v499
  %666 = vmatpush.bf16.msra.mxu0 %v498
  %667 = vmatpush.bf16.msra.mxu0 %v497
  %668 = vmatmul.bf16.gmra.mxu0 %v176
  %v669 = vpop.f32.mrf.mxu0
  %v670 = vadd.f32 %v657, %v669
  %v671 = vpop.f32.mrf.mxu0
  %672 = vdwg.mxu0
  %v673 = vmax.f32 %v670, 0.0
  %v674 = vpack.c.bf16 %v673, %v673
  %v675 = vld [vmem:[%s3] sm:$0xf]
  %v676 = vld [vmem:[%s3 + $0x4] sm:$0xf]
  %v677 = vld [vmem:[%s3 + $0x8] sm:$0xf]
  %v678 = vld [vmem:[%s3 + $0xc] sm:$0xf]
  %v679 = vld [vmem:[%s4] sm:$0x1]
  %v681 = vperm.slane %v679, 0
  %v687 = vunpack.c.l.b16 %v675
  %v688 = vunpack.c.l.b16 %v676
  %v689 = vunpack.c.l.b16 %v677
  %v690 = vunpack.c.l.b16 %v678
  %v691 = vpack.c.b16 %v688, %v687
  %v692 = vpack.c.b16 %v690, %v689
  %vm695 = vcmask 261120
  %v697 = vsel %vm695, %v674, 0
  %699 = vmatpush.bf16.msra.mxu0 0
  %700 = vmatpush.bf16.msra.mxu0 0
  %701 = vmatpush.bf16.msra.mxu0 0
  %702 = vmatpush.bf16.msra.mxu0 0
  %703 = vmatpush.bf16.msra.mxu0 0
  %704 = vmatpush.bf16.msra.mxu0 0
  %705 = vmatpush.bf16.msra.mxu0 %v692
  %706 = vmatpush.bf16.msra.mxu0 %v691
  %707 = vmatmul.bf16.gmra.mxu0 %v697
  %v708 = vpop.f32.mrf.mxu0
  %v709 = vadd.f32 %v681, %v708
  %v710 = vpop.f32.mrf.mxu0
  %711 = vdwg.mxu0
  %712 = vst [vmem:[%s5] sm:$0xff] %v709
  // Predicated region
  $region22: #{metazoan_q_forward.1} parent=0 // pred_check
    _
  $region23: #{metazoan_q_forward.1} parent=0 // pred_check_branch
    %714 = sbr.rel (0) target = $region25
  $region24: #{metazoan_q_forward.1} parent=0 // pred_region
    _
  $region25: #{metazoan_q_forward.1} parent=0 // pred_fallthru
    _
  // Predicated region
  $region26: #{metazoan_q_forward.1} parent=0 // pred_check
    _
  $region27: #{metazoan_q_forward.1} parent=0 // pred_check_branch
    %716 = sbr.rel (0) target = $region29
  $region28: #{metazoan_q_forward.1} parent=0 // pred_region
    _
  $region29: #{metazoan_q_forward.1} parent=0 // pred_fallthru
    _

</llo_original>
